<compile_context>
chip_gen: v6e
topology: v6e:2x2x1
jax: 0.10.0
libtpu: 0.0.40
codegen_flags: <defaults>
</compile_context>

<pallas_src>
import math

import jax
import jax.numpy as jnp
from jax.experimental import pallas as pl
from jax.experimental.pallas import tpu as pltpu


def _round_up(a: int, b: int) -> int:
    return ((a + b - 1) // b) * b


def _adapter_mlp_kernel(x_ref, wa_ref, ba_ref, wb_ref, bb_ref, o_ref):
    # x_ref:  (TM, IN)    input rows in their native dtype (e.g. f32)
    # wa_ref: (IN, HID)   bf16 conv_A weight (transposed), whole array
    # ba_ref: (1, HID)    f32  conv_A bias
    # wb_ref: (HID, OUT)  bf16 conv_B weight (transposed), whole array
    # bb_ref: (1, OUT)    f32  conv_B bias
    # o_ref:  (TM, OUT)   bf16 output tile
    x = x_ref[...].astype(wa_ref.dtype)  # in-kernel cast: free under HBM slack

    # conv_A on the MXU, f32 accumulation.
    h = jnp.dot(x, wa_ref[...], preferred_element_type=jnp.float32)
    h = h + ba_ref[...]

    # SiLU in f32 (EUP sigmoid + VPU mul).
    h = h * jax.nn.sigmoid(h)

    # conv_B on the MXU: bf16 inputs, f32 accumulation.
    h = h.astype(wb_ref.dtype)
    y = jnp.dot(h, wb_ref[...], preferred_element_type=jnp.float32)
    y = y + bb_ref[...]

    o_ref[...] = y.astype(o_ref.dtype)


def prepare_adapter_params(wa, ba, wb, bb, compute_dtype=jnp.bfloat16):
    """One-time (init-time) parameter prep, hoisted out of the forward path.

    wa: (hidden_dim, in_features)   torch Linear layout
    ba: (hidden_dim,)
    wb: (out_features, hidden_dim)  torch Linear layout
    bb: (out_features,)
    Returns (wa_t, ba2d, wb_t, bb2d) ready for adapter_mlp().
    """
    wa_t = jnp.asarray(wa).T.astype(compute_dtype)          # (IN, HID)
    wb_t = jnp.asarray(wb).T.astype(compute_dtype)          # (HID, OUT)
    ba2d = jnp.asarray(ba).astype(jnp.float32).reshape(1, -1)
    bb2d = jnp.asarray(bb).astype(jnp.float32).reshape(1, -1)
    return wa_t, ba2d, wb_t, bb2d


def adapter_mlp(x, wa_t, ba2d, wb_t, bb2d, *, tile_rows=1024,
                out_dtype=jnp.bfloat16, io_buffers=2):
    """RepAdapter MLP forward.

    x:    (..., in_features), native dtype (f32 or bf16)
    wa_t: (in_features, hidden_dim)   prepared by prepare_adapter_params
    ba2d: (1, hidden_dim)
    wb_t: (hidden_dim, out_features)
    bb2d: (1, out_features)
    """
    in_features, hidden_dim = wa_t.shape
    out_features = wb_t.shape[1]
    assert x.shape[-1] == in_features
    compute_dtype = wa_t.dtype

    lead_shape = x.shape[:-1]
    x2d = x.reshape(-1, in_features)
    n_rows = x2d.shape[0]

    # Empty input: nothing to do (grid=(0,) would not lower).
    if n_rows == 0:
        return jnp.zeros((*lead_shape, out_features), out_dtype)

    # --- Row tiling -----------------------------------------------------------
    # 16-row alignment satisfies bf16 sublane packing (and f32's 8).
    row_align = 16
    min_rows = _round_up(n_rows, row_align)
    tm = min(_round_up(tile_rows, row_align), min_rows)

    # v7x megacore: prefer >= 2 grid steps when there is enough work to split.
    if min_rows // tm < 2 and min_rows >= 2 * row_align:
        tm = _round_up(-(-min_rows // 2), row_align)

    # Shrink tm until the per-step VMEM footprint fits a conservative budget
    # (v7x has only 64 MiB VMEM per TensorCore).
    x_bytes = jnp.dtype(x.dtype).itemsize
    out_bytes = jnp.dtype(out_dtype).itemsize
    cd_bytes = jnp.dtype(compute_dtype).itemsize

    def tile_vmem_bytes(tm_):
        return (io_buffers * tm_ * in_features * x_bytes          # x tiles
                + io_buffers * tm_ * out_features * out_bytes     # out tiles
                + (in_features * hidden_dim
                   + hidden_dim * out_features) * cd_bytes        # weights (1x)
                + (hidden_dim + out_features) * 4                 # biases
                + tm_ * (hidden_dim + out_features) * 4)          # f32 interm.

    VMEM_BUDGET = 40 * 1024 * 1024
    while tm > row_align and tile_vmem_bytes(tm) > VMEM_BUDGET:
        tm = _round_up(tm // 2, row_align)

    padded_rows = _round_up(n_rows, tm)
    grid = (padded_rows // tm,)  # "parallel": v7x megacore shards this axis

    # Only pad rows when actually needed (one extra pass over x otherwise).
    x_in = x2d
    if padded_rows != n_rows:
        x_in = jnp.pad(x2d, ((0, padded_rows - n_rows), (0, 0)))

    vmem_needed = tile_vmem_bytes(tm)
    vmem_limit = int(min(max(int(1.25 * vmem_needed) + (2 << 20),
                             16 * 1024 * 1024),
                         48 * 1024 * 1024))

    cost = pl.CostEstimate(
        flops=2 * padded_rows * (in_features * hidden_dim
                                 + hidden_dim * out_features),
        transcendentals=padded_rows * hidden_dim,
        bytes_accessed=int(
            padded_rows * in_features * x_bytes
            + padded_rows * out_features * out_bytes
            + (in_features * hidden_dim + hidden_dim * out_features) * cd_bytes
            + (hidden_dim + out_features) * 4),
    )

    invariant = pl.Buffered(buffer_count=1)  # no double-buffering for weights
    if io_buffers == 2:
        x_spec = pl.BlockSpec((tm, in_features), lambda i: (i, 0))
        o_spec = pl.BlockSpec((tm, out_features), lambda i: (i, 0))
    else:
        io_mode = pl.Buffered(buffer_count=io_buffers)
        x_spec = pl.BlockSpec((tm, in_features), lambda i: (i, 0),
                              pipeline_mode=io_mode)
        o_spec = pl.BlockSpec((tm, out_features), lambda i: (i, 0),
                              pipeline_mode=io_mode)

    out = pl.pallas_call(
        _adapter_mlp_kernel,
        out_shape=jax.ShapeDtypeStruct((padded_rows, out_features), out_dtype),
        grid_spec=pltpu.PrefetchScalarGridSpec(
            num_scalar_prefetch=0,
            grid=grid,
            in_specs=[
                x_spec,
                pl.BlockSpec((in_features, hidden_dim), lambda i: (0, 0),
                             pipeline_mode=invariant),
                pl.BlockSpec((1, hidden_dim), lambda i: (0, 0),
                             pipeline_mode=invariant),
                pl.BlockSpec((hidden_dim, out_features), lambda i: (0, 0),
                             pipeline_mode=invariant),
                pl.BlockSpec((1, out_features), lambda i: (0, 0),
                             pipeline_mode=invariant),
            ],
            out_specs=o_spec,
        ),
        compiler_params=pltpu.CompilerParams(
            dimension_semantics=("parallel",),
            vmem_limit_bytes=vmem_limit,
        ),
        cost_estimate=cost,
    )(x_in, wa_t, ba2d, wb_t, bb2d)

    if padded_rows != n_rows:
        out = out[:n_rows]
    return out.reshape(*lead_shape, out_features)


def xavier_uniform(key, shape, dtype=jnp.float32):
    # torch.nn.init.xavier_uniform_ on a Linear weight (out, in):
    # bound = sqrt(6 / (fan_in + fan_out))
    fan_out, fan_in = shape
    bound = math.sqrt(6.0 / (fan_in + fan_out))
    return jax.random.uniform(key, shape, dtype, minval=-bound, maxval=bound)


if __name__ == "__main__":
    # Small, consistent shapes: batch=2, seq=8 tokens, in=32, hidden=16, out=64.
    IN_FEATURES, HIDDEN_DIM, OUT_FEATURES = 32, 16, 64
    B, S = 2, 8

    key = jax.random.PRNGKey(0)
    k_x, k_wa, k_wb = jax.random.split(key, 3)

    x = jax.random.normal(k_x, (B, S, IN_FEATURES), dtype=jnp.float32)

    # Parameters, deterministic, torch Linear layout (out_features, in_features).
    wa = xavier_uniform(k_wa, (HIDDEN_DIM, IN_FEATURES))
    ba = jnp.zeros((HIDDEN_DIM,), jnp.float32)
    wb = xavier_uniform(k_wb, (OUT_FEATURES, HIDDEN_DIM))
    bb = jnp.zeros((OUT_FEATURES,), jnp.float32)

    # One-time parameter prep (hoisted out of the per-forward path).
    params = prepare_adapter_params(wa, ba, wb, bb)

    y = adapter_mlp(x, *params)
    y = jax.block_until_ready(y)
    assert y.shape == (B, S, OUT_FEATURES)

    # Pure-JAX reference with the same autocast-style bf16 rounding.
    xr = x.astype(jnp.bfloat16).astype(jnp.float32)
    war = wa.astype(jnp.bfloat16).astype(jnp.float32)
    wbr = wb.astype(jnp.bfloat16).astype(jnp.float32)
    h_ref = xr @ war.T + ba
    h_ref = h_ref * jax.nn.sigmoid(h_ref)
    h_ref = h_ref.astype(jnp.bfloat16).astype(jnp.float32)
    y_ref = h_ref @ wbr.T + bb

    y32 = y.astype(jnp.float32)
    assert jnp.allclose(y32, y_ref, atol=3e-2, rtol=3e-2), \
        float(jnp.max(jnp.abs(y32 - y_ref)))

    print("KERNEL_OK")
</pallas_src>

<mosaic_0001>
module attributes {stable_mosaic.version = 11 : i64} {
  func.func @_adapter_mlp_kernel(%arg0: i32, %arg1: memref<16x32xf32, #tpu.memory_space<vmem>>, %arg2: memref<32x16xbf16, #tpu.memory_space<vmem>>, %arg3: memref<1x16xf32, #tpu.memory_space<vmem>>, %arg4: memref<16x64xbf16, #tpu.memory_space<vmem>>, %arg5: memref<1x64xf32, #tpu.memory_space<vmem>>, %arg6: memref<16x64xbf16, #tpu.memory_space<vmem>>) attributes {dimension_semantics = [#tpu.dimension_semantics<parallel>], iteration_bounds = array<i64: 1>, scalar_prefetch = 0 : i64, scratch_operands = 0 : i64, tpu.core_type = #tpu.core_type<tc>, window_params = [{transform_indices = @transform_0, window_bounds = array<i64: 16, 32>}, {pipeline_mode = #tpu.pipeline_mode<synchronous>, transform_indices = @transform_1, window_bounds = array<i64: 32, 16>}, {pipeline_mode = #tpu.pipeline_mode<synchronous>, transform_indices = @transform_2, window_bounds = array<i64: 1, 16>}, {pipeline_mode = #tpu.pipeline_mode<synchronous>, transform_indices = @transform_3, window_bounds = array<i64: 16, 64>}, {pipeline_mode = #tpu.pipeline_mode<synchronous>, transform_indices = @transform_4, window_bounds = array<i64: 1, 64>}, {transform_indices = @transform_5, window_bounds = array<i64: 16, 64>}]} {
    %c0 = arith.constant 0 : index
    %c0_0 = arith.constant 0 : index
    %0 = vector.load %arg1[%c0, %c0_0] : memref<16x32xf32, #tpu.memory_space<vmem>>, vector<16x32xf32>
    %1 = arith.truncf %0 : vector<16x32xf32> to vector<16x32xbf16>
    %c0_1 = arith.constant 0 : index
    %c0_2 = arith.constant 0 : index
    %2 = vector.load %arg2[%c0_1, %c0_2] : memref<32x16xbf16, #tpu.memory_space<vmem>>, vector<32x16xbf16>
    %cst = arith.constant dense<0.000000e+00> : vector<16x16xf32>
    %3 = tpu.matmul %1, %2, %cst {dimension_numbers = #tpu.dot_dimension_numbers<[1], [0], [0], [1], [0, 0, 1, 1], [], []>} : vector<16x32xbf16>, vector<32x16xbf16>, vector<16x16xf32> -> vector<16x16xf32>
    %c0_3 = arith.constant 0 : index
    %c0_4 = arith.constant 0 : index
    %4 = vector.load %arg3[%c0_3, %c0_4] : memref<1x16xf32, #tpu.memory_space<vmem>>, vector<1x16xf32>
    %5 = vector.broadcast %4 : vector<1x16xf32> to vector<16x16xf32>
    %6 = arith.addf %3, %5 : vector<16x16xf32>
    %7 = arith.negf %6 : vector<16x16xf32>
    %8 = math.exp %7 : vector<16x16xf32>
    %cst_5 = arith.constant 1.000000e+00 : f32
    %9 = vector.broadcast %cst_5 : f32 to vector<16x16xf32>
    %10 = arith.addf %9, %8 : vector<16x16xf32>
    %11 = arith.divf %9, %10 : vector<16x16xf32>
    %12 = arith.mulf %6, %11 : vector<16x16xf32>
    %13 = arith.truncf %12 : vector<16x16xf32> to vector<16x16xbf16>
    %c0_6 = arith.constant 0 : index
    %c0_7 = arith.constant 0 : index
    %14 = vector.load %arg4[%c0_6, %c0_7] : memref<16x64xbf16, #tpu.memory_space<vmem>>, vector<16x64xbf16>
    %cst_8 = arith.constant dense<0.000000e+00> : vector<16x64xf32>
    %15 = tpu.matmul %13, %14, %cst_8 {dimension_numbers = #tpu.dot_dimension_numbers<[1], [0], [0], [1], [0, 0, 1, 1], [], []>} : vector<16x16xbf16>, vector<16x64xbf16>, vector<16x64xf32> -> vector<16x64xf32>
    %c0_9 = arith.constant 0 : index
    %c0_10 = arith.constant 0 : index
    %16 = vector.load %arg5[%c0_9, %c0_10] : memref<1x64xf32, #tpu.memory_space<vmem>>, vector<1x64xf32>
    %17 = vector.broadcast %16 : vector<1x64xf32> to vector<16x64xf32>
    %18 = arith.addf %15, %17 : vector<16x64xf32>
    %19 = arith.truncf %18 : vector<16x64xf32> to vector<16x64xbf16>
    %c0_11 = arith.constant 0 : index
    %c0_12 = arith.constant 0 : index
    %20 = vector.load %arg6[%c0_11, %c0_12] : memref<16x64xbf16, #tpu.memory_space<vmem>>, vector<16x64xbf16>
    tpu.vector_store %arg6[%c0_11, %c0_12], %19 {strides = array<i32>} : memref<16x64xbf16, #tpu.memory_space<vmem>>, vector<16x64xbf16>,
    return
  }
  func.func @transform_0(%arg0: i32) -> (i32, i32) {
    %c0_i32 = arith.constant 0 : i32
    %c0_i32_0 = arith.constant 0 : i32
    return %arg0, %c0_i32 : i32, i32
  }
  func.func @transform_1(%arg0: i32) -> (i32, i32) {
    %c0_i32 = arith.constant 0 : i32
    %c0_i32_0 = arith.constant 0 : i32
    %c0_i32_1 = arith.constant 0 : i32
    return %c0_i32, %c0_i32_0 : i32, i32
  }
  func.func @transform_2(%arg0: i32) -> (i32, i32) {
    %c0_i32 = arith.constant 0 : i32
    %c0_i32_0 = arith.constant 0 : i32
    %c0_i32_1 = arith.constant 0 : i32
    return %c0_i32, %c0_i32_0 : i32, i32
  }
  func.func @transform_3(%arg0: i32) -> (i32, i32) {
    %c0_i32 = arith.constant 0 : i32
    %c0_i32_0 = arith.constant 0 : i32
    %c0_i32_1 = arith.constant 0 : i32
    return %c0_i32, %c0_i32_0 : i32, i32
  }
  func.func @transform_4(%arg0: i32) -> (i32, i32) {
    %c0_i32 = arith.constant 0 : i32
    %c0_i32_0 = arith.constant 0 : i32
    %c0_i32_1 = arith.constant 0 : i32
    return %c0_i32, %c0_i32_0 : i32, i32
  }
  func.func @transform_5(%arg0: i32) -> (i32, i32) {
    %c0_i32 = arith.constant 0 : i32
    %c0_i32_0 = arith.constant 0 : i32
    return %arg0, %c0_i32 : i32, i32
  }
}

</mosaic_0001>

<llo_original>
// kernel: tpu_custom_call.1
$region0: #{tpu_custom_call.1}
  #allocation0 [shape = 'u32[]', space=smem, size = 0x4, offset = 0x4, fixed_abs, tag = 'smem constant byte address 0x4 - core index']
  #allocation1 [shape = 'u32[144,128]{1,0:T(1,128)}', space=vmem, size = 0x12000, scoped, tag = 'internal scratch']
  %s0 = inlined_call_operand.vmem [shape: f32[16,32], index: 0, kind: input, shape index: {}]
  %s1 = inlined_call_operand.vmem [shape: bf16[32,16], index: 1, kind: input, shape index: {}]
  %s2 = inlined_call_operand.vmem [shape: f32[1,16], index: 2, kind: input, shape index: {}]
  %s3 = inlined_call_operand.vmem [shape: bf16[16,64], index: 3, kind: input, shape index: {}]
  %s4 = inlined_call_operand.vmem [shape: f32[1,64], index: 4, kind: input, shape index: {}]
  %s5 = inlined_call_operand.hbm [shape: bf16[16,64], index: 5, kind: output, shape index: {}]
  %s6 = sld [smem:[#allocation0]]
  $region30: #{tpu_custom_call.1} parent=0
    _
  %s8 = ssub.s32 1, %s6
  %s9 = scalar_select 0, %s8, %s6
  $region1: #{tpu_custom_call.1} parent=0
    #allocation2 [shape = 'u8[4096]{0}', space=vmem, size = 0x1000, scoped, tag = 'output window, operand 0, single buffered']
    #allocation3 [shape = 's32[1]{0}', space=sflag, size = 0x4, scoped, tag = 'scoped memory for tpu_custom_call.1']
    %10 = vsyncpa [#allocation3], 0
    // Predicated region
    $region2: #{tpu_custom_call.1} parent=1 // pred_check
      _
    $region3: #{tpu_custom_call.1} parent=1 // pred_check_branch
      %12 = sbr.rel (0) target = $region5
    $region4: #{tpu_custom_call.1} parent=1 // pred_region
      _
    $region5: #{tpu_custom_call.1} parent=1 // pred_fallthru
      _
    // Predicated region
    $region6: #{tpu_custom_call.1} parent=1 // pred_check
      _
    $region7: #{tpu_custom_call.1} parent=1 // pred_check_branch
      %14 = sbr.rel (0) target = $region9
    $region8: #{tpu_custom_call.1} parent=1 // pred_region
      _
    $region9: #{tpu_custom_call.1} parent=1 // pred_fallthru
      _
    // Predicated region
    $region10: #{tpu_custom_call.1} parent=1 // pred_check
      _
    $region11: #{tpu_custom_call.1} parent=1 // pred_check_branch
      %16 = sbr.rel (0) target = $region13
    $region12: #{tpu_custom_call.1} parent=1 // pred_region
      _
    $region13: #{tpu_custom_call.1} parent=1 // pred_fallthru
      _
    // Predicated region
    $region14: #{tpu_custom_call.1} parent=1 // pred_check
      _
    $region15: #{tpu_custom_call.1} parent=1 // pred_check_branch
      %18 = sbr.rel (0) target = $region17
    $region16: #{tpu_custom_call.1} parent=1 // pred_region
      _
    $region17: #{tpu_custom_call.1} parent=1 // pred_fallthru
      _
    // Predicated region
    $region18: #{tpu_custom_call.1} parent=1 // pred_check
      _
    $region19: #{tpu_custom_call.1} parent=1 // pred_check_branch
      %20 = sbr.rel (0) target = $region21
    $region20: #{tpu_custom_call.1} parent=1 // pred_region
      _
    $region21: #{tpu_custom_call.1} parent=1 // pred_fallthru
      _
    %v22 = vld [vmem:[%s0] sm:$0xff]
    %v23 = vld [vmem:[%s0 + $0x8] sm:$0xff]
    %v24 = vpack.c.bf16 %v23, %v22
    %v25 = vld [vmem:[%s1] sm:$0xf]
    %v26 = vld [vmem:[%s1 + $0x4] sm:$0xf]
    %v27 = vld [vmem:[%s1 + $0x8] sm:$0xf]
    %v28 = vld [vmem:[%s1 + $0xc] sm:$0xf]
    %v29 = vld [vmem:[%s2] sm:$0x1]
    %v31 = vlaneseq
    %v32 = vshrl.u32 %v31, 7
    %v33 = vsub.s32 0, %v32
    %v34 = vrot.slane %v29, %v33
    %v40 = vunpack.c.l.b16 %v25
    %v41 = vunpack.c.l.b16 %v26
    %v42 = vunpack.c.l.b16 %v27
    %v43 = vunpack.c.l.b16 %v28
    %v44 = vpack.c.b16 %v41, %v40
    %v45 = vpack.c.b16 %v43, %v42
    %vm48 = vcmask 261120
    %v50 = vsel %vm48, %v24, 0
    %52 = vmatprep.subr.bf16.mxu0 0
    %53 = vmatpush1.bf16.msra.mxu0 0
    %54 = vmatprep.subr.bf16.mxu0 0
    %55 = vmatpush1.bf16.msra.mxu0 0
    %56 = vmatprep.subr.bf16.mxu0 0
    %57 = vmatpush1.bf16.msra.mxu0 0
    %58 = vmatprep.subr.bf16.mxu0 0
    %59 = vmatpush1.bf16.msra.mxu0 0
    %60 = vmatprep.subr.bf16.mxu0 0
    %61 = vmatpush1.bf16.msra.mxu0 0
    %62 = vmatprep.subr.bf16.mxu0 0
    %63 = vmatpush1.bf16.msra.mxu0 0
    %64 = vmatprep.subr.bf16.mxu0 0
    %65 = vmatpush1.bf16.msra.mxu0 %v45
    %66 = vmatprep.subr.bf16.mxu0 0
    %67 = vmatpush1.bf16.msra.mxu0 %v44
    %68 = vmatprep.subr.bf16.mxu0 0
    %69 = vmatpush2.bf16.msra.mxu0 0
    %70 = vmatprep.subr.bf16.mxu0 0
    %71 = vmatpush2.bf16.msra.mxu0 0
    %72 = vmatprep.subr.bf16.mxu0 0
    %73 = vmatpush2.bf16.msra.mxu0 0
    %74 = vmatprep.subr.bf16.mxu0 0
    %75 = vmatpush2.bf16.msra.mxu0 0
    %76 = vmatprep.subr.bf16.mxu0 0
    %77 = vmatpush2.bf16.msra.mxu0 0
    %78 = vmatprep.subr.bf16.mxu0 0
    %79 = vmatpush2.bf16.msra.mxu0 0
    %80 = vmatprep.subr.bf16.mxu0 0
    %81 = vmatpush2.bf16.msra.mxu0 0
    %82 = vmatprep.subr.bf16.mxu0 0
    %83 = vmatpush2.bf16.msra.mxu0 0
    %84 = vmatprep.mubr.bf16.mxu0 0
    %85 = vmatmul.mubr.bf16.gmra.mxu0 %v50
    %v86 = vpop.f32.mrf.mxu0
    %v87 = vadd.f32 %v34, %v86
    %v88 = vpop.f32.mrf.mxu0
    %v89 = vpop.f32.mrf.mxu0
    %v90 = vadd.f32 %v34, %v89
    %v91 = vpop.f32.mrf.mxu0
    %92 = vdwg.mxu0
    %v93 = vxor.u32 %v87, 2147483648
    %v94 = vxor.u32 %v90, 2147483648
    %v95 = vmul.f32 %v93, 1.442695
    %v96 = vpow.pop %v95
    %v97 = vmul.f32 %v94, 1.442695
    %v98 = vpow.pop %v97
    %v99 = vadd.f32 %v96, 1.0
    %v100 = vadd.f32 %v98, 1.0
    %v101 = vrcp.pop %v99
    %v102 = vmul.f32 1.0, %v101
    %v103 = vrcp.pop %v100
    %v104 = vmul.f32 1.0, %v103
    %v105 = vmul.f32 %v87, %v102
    %v106 = vmul.f32 %v90, %v104
    %v107 = vpack.c.bf16 %v106, %v105
    %v108 = vld [vmem:[%s3] sm:$0xf]
    %v109 = vld [vmem:[%s3 + $0x4] sm:$0xf]
    %v110 = vld [vmem:[%s4] sm:$0x1]
    %v112 = vlaneseq
    %v113 = vshrl.u32 %v112, 7
    %v114 = vsub.s32 0, %v113
    %v115 = vrot.slane %v110, %v114
    %v119 = vunpack.c.l.b16 %v108
    %v120 = vunpack.c.l.b16 %v109
    %v121 = vpack.c.b16 %v120, %v119
    %vm123 = vcmask 130048
    %v125 = vsel %vm123, %v107, 0
    %127 = vmatprep.subr.bf16.mxu0 0
    %128 = vmatpush1.bf16.msra.mxu0 0
    %129 = vmatprep.subr.bf16.mxu0 0
    %130 = vmatpush1.bf16.msra.mxu0 0
    %131 = vmatprep.subr.bf16.mxu0 0
    %132 = vmatpush1.bf16.msra.mxu0 0
    %133 = vmatprep.subr.bf16.mxu0 0
    %134 = vmatpush1.bf16.msra.mxu0 0
    %135 = vmatprep.subr.bf16.mxu0 0
    %136 = vmatpush1.bf16.msra.mxu0 0
    %137 = vmatprep.subr.bf16.mxu0 0
    %138 = vmatpush1.bf16.msra.mxu0 0
    %139 = vmatprep.subr.bf16.mxu0 0
    %140 = vmatpush1.bf16.msra.mxu0 0
    %141 = vmatprep.subr.bf16.mxu0 0
    %142 = vmatpush1.bf16.msra.mxu0 %v121
    %143 = vmatprep.subr.bf16.mxu0 0
    %144 = vmatpush2.bf16.msra.mxu0 0
    %145 = vmatprep.subr.bf16.mxu0 0
    %146 = vmatpush2.bf16.msra.mxu0 0
    %147 = vmatprep.subr.bf16.mxu0 0
    %148 = vmatpush2.bf16.msra.mxu0 0
    %149 = vmatprep.subr.bf16.mxu0 0
    %150 = vmatpush2.bf16.msra.mxu0 0
    %151 = vmatprep.subr.bf16.mxu0 0
    %152 = vmatpush2.bf16.msra.mxu0 0
    %153 = vmatprep.subr.bf16.mxu0 0
    %154 = vmatpush2.bf16.msra.mxu0 0
    %155 = vmatprep.subr.bf16.mxu0 0
    %156 = vmatpush2.bf16.msra.mxu0 0
    %157 = vmatprep.subr.bf16.mxu0 0
    %158 = vmatpush2.bf16.msra.mxu0 0
    %159 = vmatprep.mubr.bf16.mxu0 0
    %160 = vmatmul.mubr.bf16.gmra.mxu0 %v125
    %v161 = vpop.f32.mrf.mxu0
    %v162 = vadd.f32 %v115, %v161
    %v163 = vpop.f32.mrf.mxu0
    %v164 = vpop.f32.mrf.mxu0
    %v165 = vadd.f32 %v115, %v164
    %v166 = vpop.f32.mrf.mxu0
    %167 = vdwg.mxu0
    %v168 = vpack.c.bf16 %v165, %v162
    %v170 = vunpack.c.l.b16 %v168
    %v171 = vunpack.c.h.b16 %v168
    %v172 = vpack.c.b16 %v170, %v170
    %v173 = vpack.c.b16 %v171, %v171
    %vm176 = vcmask 519168
    %177 = vst.msk [vmem:[#allocation2] sm:$0xf] %vm176, %v172
    %178 = vst.msk [vmem:[#allocation2 + $0x4] sm:$0xf] %vm176, %v173
    // Predicated region
    $region22: #{tpu_custom_call.1} parent=1 // pred_check
      _
    $region23: #{tpu_custom_call.1} parent=1 // pred_check_branch
      %180 = sbr.rel (0) target = $region25
    $region24: #{tpu_custom_call.1} parent=1 // pred_region
      %s182 = ssub.s32 128, 128
      %183 = vsyncadd [#allocation3], %s182
      %s184 = sshll.u32 [#allocation2], 4
      %s185 = int_to_ptr.vmem [resolvable:$true] %s184
      %190 = dma.vmem_to_hbm [thread:$0]  %s185, 128, %s5, [#allocation3], 64, 64, 4
    $region25: #{tpu_custom_call.1} parent=1 // pred_fallthru
      _
    // Predicated region
    $region26: #{tpu_custom_call.1} parent=1 // pred_check
      _
    $region27: #{tpu_custom_call.1} parent=1 // pred_check_branch
      %192 = sbr.rel (0) target = $region29
    $region28: #{tpu_custom_call.1} parent=1 // pred_region
      %193 = dma.done [#allocation3], 128
    $region29: #{tpu_custom_call.1} parent=1 // pred_fallthru
      _
    %194 = vsyncpa [#allocation3], 1

</llo_original>
